<compile_context>
chip_gen: v6e
topology: v6e:2x2x1
jax: 0.10.0
libtpu: 0.0.40
codegen_flags: <defaults>
</compile_context>

<pallas_src>
import jax
import jax.numpy as jnp
from jax import lax
from jax.experimental import pallas as pl
from jax.experimental.pallas import tpu as pltpu

NEG_SLOPE = 0.01        # torch.nn.functional.leaky_relu default negative_slope
LANE = 128
SUBLANE = 8
_MIB = 1024 * 1024


def _round_up(n, m):
    return ((n + m - 1) // m) * m


def _cdiv(a, b):
    return (a + b - 1) // b


def _leaky_relu(x):
    return jnp.where(x >= 0, x, NEG_SLOPE * x)


# ---------------------- generation-aware hardware hints ----------------------

def _tpu_generation():
    try:
        kind = jax.devices()[0].device_kind.lower()
    except Exception:
        return 6
    for g in (7, 6, 5, 4, 3, 2, 1):
        if f"v{g}" in kind:
            return g
    return 6


def _vmem_capacity_bytes(gen):
    try:
        return int(pltpu.get_tpu_info().vmem_capacity_bytes)
    except Exception:
        # v7x: 64 MiB per TensorCore; v5e/v6e: 128 MiB.
        return (64 if gen >= 7 else 128) * _MIB


def _pad_feature_dim(d, gen):
    # v6e/v7x MXUs are 2x256^2: pad mid-size (129..256) K/N dims to 256; else 128.
    if gen >= 6 and LANE < d <= 2 * LANE:
        return 2 * LANE
    return _round_up(d, LANE)


# --------------------------- parameter preparation ---------------------------

def prepare_mlp_params(w_in, b_in, w_h, b_h, w_out, b_out, gen=None):
    """One-time pad + bf16 cast of the weights (hoisted out of the forward path).

    Weights are (in_features, out_features) = torch nn.Linear weight transposed,
    biases (1, out_features). w_h/b_h stack hidden layers on axis 0 (or None)."""
    if gen is None:
        gen = _tpu_generation()
    in_dim, hidden_dim = int(w_in.shape[0]), int(w_in.shape[1])
    n_classes = int(w_out.shape[1])
    n_h = 0 if w_h is None else int(w_h.shape[0])

    in_p = _pad_feature_dim(in_dim, gen)
    hid_p = _pad_feature_dim(hidden_dim, gen)
    out_p = _pad_feature_dim(n_classes, gen)

    w_in_p = jnp.zeros((in_p, hid_p), jnp.bfloat16
                       ).at[:in_dim, :hidden_dim].set(w_in.astype(jnp.bfloat16))
    b_in_p = jnp.zeros((1, hid_p), jnp.float32
                       ).at[:, :hidden_dim].set(jnp.reshape(b_in, (1, -1)).astype(jnp.float32))
    w_out_p = jnp.zeros((hid_p, out_p), jnp.bfloat16
                        ).at[:hidden_dim, :n_classes].set(w_out.astype(jnp.bfloat16))
    b_out_p = jnp.zeros((1, out_p), jnp.float32
                        ).at[:, :n_classes].set(jnp.reshape(b_out, (1, -1)).astype(jnp.float32))
    if n_h > 0:
        w_h_p = jnp.zeros((n_h, hid_p, hid_p), jnp.bfloat16
                          ).at[:, :hidden_dim, :hidden_dim].set(w_h.astype(jnp.bfloat16))
        b_h_p = jnp.zeros((n_h, 1, hid_p), jnp.float32
                          ).at[:, :, :hidden_dim].set(
                              jnp.reshape(b_h, (n_h, 1, -1)).astype(jnp.float32))
    else:
        w_h_p, b_h_p = None, None

    meta = dict(in_dim=in_dim, hidden_dim=hidden_dim, n_classes=n_classes,
                n_h=n_h, in_p=in_p, hid_p=hid_p, out_p=out_p, gen=gen)
    return dict(w_in=w_in_p, b_in=b_in_p, w_h=w_h_p, b_h=b_h_p,
                w_out=w_out_p, b_out=b_out_p, meta=meta)


# --------------------------------- kernels -----------------------------------

def _make_mlp_kernel(n_h, unroll_limit=4):
    """Fused MLP kernel for a fixed (static) number of hidden layers."""
    if n_h > 0:
        def kernel(x_ref, w_in_ref, b_in_ref, w_h_ref, b_h_ref,
                   w_out_ref, b_out_ref, o_ref):
            # hidden = act(l_in(dropout(x)))   (dropout == identity, eval mode)
            h = jnp.dot(x_ref[...], w_in_ref[...],
                        preferred_element_type=jnp.float32) + b_in_ref[...]
            h = _leaky_relu(h)

            def layer(i, h):
                h = jnp.dot(h.astype(jnp.bfloat16), w_h_ref[i],
                            preferred_element_type=jnp.float32) + b_h_ref[i]
                return _leaky_relu(h)

            if n_h <= unroll_limit:
                for i in range(n_h):          # short stack: static unroll
                    h = layer(i, h)
            else:
                # deep stack: fori_loop bounds live ranges / code size
                h = lax.fori_loop(0, n_h, layer, h)

            # output = l_out(dropout(hidden))
            out = jnp.dot(h.astype(jnp.bfloat16), w_out_ref[...],
                          preferred_element_type=jnp.float32) + b_out_ref[...]
            o_ref[...] = out.astype(o_ref.dtype)
    else:
        def kernel(x_ref, w_in_ref, b_in_ref, w_out_ref, b_out_ref, o_ref):
            h = _leaky_relu(jnp.dot(x_ref[...], w_in_ref[...],
                                    preferred_element_type=jnp.float32)
                            + b_in_ref[...])
            out = jnp.dot(h.astype(jnp.bfloat16), w_out_ref[...],
                          preferred_element_type=jnp.float32) + b_out_ref[...]
            o_ref[...] = out.astype(o_ref.dtype)
    return kernel


def _const_spec(block_shape, single_buffer):
    """Grid-invariant (VMEM-resident) block; single-buffer it when supported."""
    ndim = len(block_shape)
    index_map = lambda *i: (0,) * ndim
    if single_buffer:
        try:
            return pl.BlockSpec(block_shape, index_map,
                                pipeline_mode=pl.Buffered(1))
        except Exception:       # older/newer API without pipeline_mode support
            pass
    return pl.BlockSpec(block_shape, index_map)


def _choose_tile_b(B, in_p, hid_p, out_p, act_budget_bytes, min_steps):
    """Batch tile from a VMEM budget; minimize b_pad - B; honor min grid steps."""
    # per-row activation footprint: x (bf16, double-buffered) + out (bf16,
    # double-buffered) + ~2 live f32 hidden intermediates.
    per_row = 2 * (2 * in_p) + 2 * (2 * out_p) + 2 * (4 * hid_p)
    max_tile_b = max(SUBLANE,
                     (act_budget_bytes // max(per_row, 1)) // SUBLANE * SUBLANE)
    n_steps = max(_cdiv(B, max_tile_b), 1)
    if B >= min_steps * SUBLANE:
        n_steps = max(n_steps, min_steps)
    return _round_up(_cdiv(B, n_steps), SUBLANE)


# --------------------------------- forward -----------------------------------

def mlp_forward(x, params, out_dtype=jnp.bfloat16):
    """x: (B, in_dim) -> (B, n_classes). `params` from prepare_mlp_params."""
    meta = params["meta"]
    in_dim, n_classes = meta["in_dim"], meta["n_classes"]
    n_h = meta["n_h"]
    in_p, hid_p, out_p = meta["in_p"], meta["hid_p"], meta["out_p"]
    gen = meta["gen"]

    B = x.shape[0]
    assert x.shape[1] == in_dim

    # Generation-aware VMEM budget (do NOT hardcode 32 MiB): ~80% of per-core
    # capacity, capped; v7x (64 MiB) ends up ~51 MiB, v5e/v6e ~102 MiB.
    vmem_limit = max(min(int(_vmem_capacity_bytes(gen) * 0.8), 110 * _MIB),
                     32 * _MIB)

    # Conservative resident-weight budget (assume double-buffer fallback).
    weight_bytes = 2 * (in_p * hid_p + n_h * hid_p * hid_p + hid_p * out_p)
    bias_bytes = 4 * (hid_p + n_h * hid_p + out_p)
    act_budget = max(vmem_limit - 2 * (weight_bytes + bias_bytes) - 4 * _MIB,
                     2 * _MIB)

    # v7x has 2 TensorCores: make sure the "parallel" batch axis has >= 2 steps
    # when B is big enough (harmless elsewhere).
    min_steps = 2 if gen >= 7 else 1
    tile_b = _choose_tile_b(B, in_p, hid_p, out_p, act_budget, min_steps)
    b_pad = _round_up(B, tile_b)
    grid = (b_pad // tile_b,)

    # Activations: skip the extra HBM pad/copy pass when layout already matches.
    if B == b_pad and in_dim == in_p:
        x_p = x.astype(jnp.bfloat16)
    else:
        x_p = jnp.zeros((b_pad, in_p), jnp.bfloat16
                        ).at[:B, :in_dim].set(x.astype(jnp.bfloat16))

    flops = 2 * b_pad * (in_p * hid_p + n_h * hid_p * hid_p + hid_p * out_p)
    bytes_accessed = (b_pad * in_p * 2 + weight_bytes + bias_bytes
                      + b_pad * out_p * 2)

    def _call(single_buffer):
        in_specs = [
            pl.BlockSpec((tile_b, in_p), lambda i: (i, 0)),      # streamed
            _const_spec((in_p, hid_p), single_buffer),           # resident
            _const_spec((1, hid_p), single_buffer),
        ]
        args = [x_p, params["w_in"], params["b_in"]]
        if n_h > 0:
            in_specs += [_const_spec((n_h, hid_p, hid_p), single_buffer),
                         _const_spec((n_h, 1, hid_p), single_buffer)]
            args += [params["w_h"], params["b_h"]]
        in_specs += [_const_spec((hid_p, out_p), single_buffer),
                     _const_spec((1, out_p), single_buffer)]
        args += [params["w_out"], params["b_out"]]

        return pl.pallas_call(
            _make_mlp_kernel(n_h),
            out_shape=jax.ShapeDtypeStruct((b_pad, out_p), jnp.bfloat16),
            grid_spec=pltpu.PrefetchScalarGridSpec(
                num_scalar_prefetch=0,
                grid=grid,
                in_specs=in_specs,
                out_specs=pl.BlockSpec((tile_b, out_p), lambda i: (i, 0)),
            ),
            compiler_params=pltpu.CompilerParams(
                dimension_semantics=("parallel",),
                vmem_limit_bytes=vmem_limit,
            ),
            cost_estimate=pl.CostEstimate(
                flops=flops, transcendentals=0, bytes_accessed=bytes_accessed),
        )(*args)

    try:
        out_padded = _call(single_buffer=True)
    except Exception:
        # Fallback if this Pallas build rejects pipeline_mode=pl.Buffered(1).
        out_padded = _call(single_buffer=False)

    out = out_padded[:B, :n_classes]          # lane-dense store inside, slice outside
    if out_dtype != jnp.bfloat16:
        out = out.astype(out_dtype)           # tiny (B, n_classes) upcast only
    return out


def mlp_reference(x, w_in, b_in, w_h, b_h, w_out, b_out):
    """Pure-JAX f32 reference implementing the same torch forward (eval mode)."""
    h = _leaky_relu(x @ w_in + b_in)
    n_h = 0 if w_h is None else w_h.shape[0]
    for i in range(n_h):
        h = _leaky_relu(h @ w_h[i] + b_h[i])
    return h @ w_out + b_out


if __name__ == "__main__":
    # Module hyper-params: MLP(in_dim=32, n_classes=16, hidden_dim=64,
    #                          dropout=0.0, n_layers=3)
    B, in_dim, hidden_dim, n_classes = 8, 32, 64, 16
    n_layers = 3
    n_hidden_layers = n_layers - 2  # number of l_hs layers

    key = jax.random.PRNGKey(0)
    ks = jax.random.split(key, 7)

    # Deterministic synthetic parameters (stored as (in, out) = torch W.T).
    w_in = jax.random.normal(ks[0], (in_dim, hidden_dim), jnp.float32) * 0.1
    b_in = jax.random.normal(ks[1], (1, hidden_dim), jnp.float32) * 0.1
    w_h = jax.random.normal(ks[2], (n_hidden_layers, hidden_dim, hidden_dim),
                            jnp.float32) * 0.1
    b_h = jax.random.normal(ks[3], (n_hidden_layers, 1, hidden_dim),
                            jnp.float32) * 0.1
    w_out = jax.random.normal(ks[4], (hidden_dim, n_classes), jnp.float32) * 0.1
    b_out = jax.random.normal(ks[5], (1, n_classes), jnp.float32) * 0.1

    x = jax.random.normal(ks[6], (B, in_dim), jnp.float32)

    # One-time parameter prep (pad + bf16 cast) hoisted out of the forward path.
    params = prepare_mlp_params(w_in, b_in, w_h, b_h, w_out, b_out)

    out = mlp_forward(x, params, out_dtype=jnp.float32)
    out = jax.block_until_ready(out)

    ref = mlp_reference(x, w_in, b_in, w_h, b_h, w_out, b_out)
    assert out.shape == (B, n_classes)
    # bf16 MXU operands / bf16 writeback vs f32 reference -> loosened tolerance.
    assert jnp.allclose(out, ref, atol=3e-2, rtol=3e-2), "mismatch vs reference"

    print("KERNEL_OK")
</pallas_src>

<mosaic_0001>
module attributes {stable_mosaic.version = 11 : i64} {
  func.func @kernel(%arg0: i32, %arg1: memref<8x128xbf16, #tpu.memory_space<vmem>>, %arg2: memref<128x128xbf16, #tpu.memory_space<vmem>>, %arg3: memref<1x128xf32, #tpu.memory_space<vmem>>, %arg4: memref<1x128x128xbf16, #tpu.memory_space<vmem>>, %arg5: memref<1x1x128xf32, #tpu.memory_space<vmem>>, %arg6: memref<128x128xbf16, #tpu.memory_space<vmem>>, %arg7: memref<1x128xf32, #tpu.memory_space<vmem>>, %arg8: memref<8x128xbf16, #tpu.memory_space<vmem>>) attributes {dimension_semantics = [#tpu.dimension_semantics<parallel>], iteration_bounds = array<i64: 1>, scalar_prefetch = 0 : i64, scratch_operands = 0 : i64, tpu.core_type = #tpu.core_type<tc>, window_params = [{transform_indices = @transform_0, window_bounds = array<i64: 8, 128>}, {pipeline_mode = #tpu.pipeline_mode<synchronous>, transform_indices = @transform_1, window_bounds = array<i64: 128, 128>}, {pipeline_mode = #tpu.pipeline_mode<synchronous>, transform_indices = @transform_2, window_bounds = array<i64: 1, 128>}, {pipeline_mode = #tpu.pipeline_mode<synchronous>, transform_indices = @transform_3, window_bounds = array<i64: 1, 128, 128>}, {pipeline_mode = #tpu.pipeline_mode<synchronous>, transform_indices = @transform_4, window_bounds = array<i64: 1, 1, 128>}, {pipeline_mode = #tpu.pipeline_mode<synchronous>, transform_indices = @transform_5, window_bounds = array<i64: 128, 128>}, {pipeline_mode = #tpu.pipeline_mode<synchronous>, transform_indices = @transform_6, window_bounds = array<i64: 1, 128>}, {transform_indices = @transform_7, window_bounds = array<i64: 8, 128>}]} {
    %c0 = arith.constant 0 : index
    %c0_0 = arith.constant 0 : index
    %0 = vector.load %arg1[%c0, %c0_0] : memref<8x128xbf16, #tpu.memory_space<vmem>>, vector<8x128xbf16>
    %c0_1 = arith.constant 0 : index
    %c0_2 = arith.constant 0 : index
    %1 = vector.load %arg2[%c0_1, %c0_2] : memref<128x128xbf16, #tpu.memory_space<vmem>>, vector<128x128xbf16>
    %cst = arith.constant dense<0.000000e+00> : vector<8x128xf32>
    %2 = tpu.matmul %0, %1, %cst {dimension_numbers = #tpu.dot_dimension_numbers<[1], [0], [0], [1], [0, 0, 1, 1], [], []>} : vector<8x128xbf16>, vector<128x128xbf16>, vector<8x128xf32> -> vector<8x128xf32>
    %c0_3 = arith.constant 0 : index
    %c0_4 = arith.constant 0 : index
    %3 = vector.load %arg3[%c0_3, %c0_4] : memref<1x128xf32, #tpu.memory_space<vmem>>, vector<1x128xf32>
    %4 = vector.broadcast %3 : vector<1x128xf32> to vector<8x128xf32>
    %5 = arith.addf %2, %4 : vector<8x128xf32>
    %cst_5 = arith.constant 0.000000e+00 : f32
    %6 = vector.broadcast %cst_5 : f32 to vector<8x128xf32>
    %7 = arith.cmpf oge, %5, %6 : vector<8x128xf32>
    %cst_6 = arith.constant 0.00999999977 : f32
    %8 = vector.broadcast %cst_6 : f32 to vector<8x128xf32>
    %9 = arith.mulf %8, %5 : vector<8x128xf32>
    %10 = arith.select %7, %5, %9 : vector<8x128xi1>, vector<8x128xf32>
    %11 = arith.truncf %10 : vector<8x128xf32> to vector<8x128xbf16>
    %c0_7 = arith.constant 0 : index
    %c0_8 = arith.constant 0 : index
    %c0_9 = arith.constant 0 : index
    %12 = vector.load %arg4[%c0_7, %c0_8, %c0_9] : memref<1x128x128xbf16, #tpu.memory_space<vmem>>, vector<1x128x128xbf16>
    %13 = vector.shape_cast %12 : vector<1x128x128xbf16> to vector<128x128xbf16>
    %cst_10 = arith.constant dense<0.000000e+00> : vector<8x128xf32>
    %14 = tpu.matmul %11, %13, %cst_10 {dimension_numbers = #tpu.dot_dimension_numbers<[1], [0], [0], [1], [0, 0, 1, 1], [], []>} : vector<8x128xbf16>, vector<128x128xbf16>, vector<8x128xf32> -> vector<8x128xf32>
    %c0_11 = arith.constant 0 : index
    %c0_12 = arith.constant 0 : index
    %c0_13 = arith.constant 0 : index
    %15 = vector.load %arg5[%c0_11, %c0_12, %c0_13] : memref<1x1x128xf32, #tpu.memory_space<vmem>>, vector<1x1x128xf32>
    %16 = vector.shape_cast %15 : vector<1x1x128xf32> to vector<1x128xf32>
    %17 = vector.broadcast %16 : vector<1x128xf32> to vector<8x128xf32>
    %18 = arith.addf %14, %17 : vector<8x128xf32>
    %cst_14 = arith.constant 0.000000e+00 : f32
    %19 = vector.broadcast %cst_14 : f32 to vector<8x128xf32>
    %20 = arith.cmpf oge, %18, %19 : vector<8x128xf32>
    %cst_15 = arith.constant 0.00999999977 : f32
    %21 = vector.broadcast %cst_15 : f32 to vector<8x128xf32>
    %22 = arith.mulf %21, %18 : vector<8x128xf32>
    %23 = arith.select %20, %18, %22 : vector<8x128xi1>, vector<8x128xf32>
    %24 = arith.truncf %23 : vector<8x128xf32> to vector<8x128xbf16>
    %c0_16 = arith.constant 0 : index
    %c0_17 = arith.constant 0 : index
    %25 = vector.load %arg6[%c0_16, %c0_17] : memref<128x128xbf16, #tpu.memory_space<vmem>>, vector<128x128xbf16>
    %cst_18 = arith.constant dense<0.000000e+00> : vector<8x128xf32>
    %26 = tpu.matmul %24, %25, %cst_18 {dimension_numbers = #tpu.dot_dimension_numbers<[1], [0], [0], [1], [0, 0, 1, 1], [], []>} : vector<8x128xbf16>, vector<128x128xbf16>, vector<8x128xf32> -> vector<8x128xf32>
    %c0_19 = arith.constant 0 : index
    %c0_20 = arith.constant 0 : index
    %27 = vector.load %arg7[%c0_19, %c0_20] : memref<1x128xf32, #tpu.memory_space<vmem>>, vector<1x128xf32>
    %28 = vector.broadcast %27 : vector<1x128xf32> to vector<8x128xf32>
    %29 = arith.addf %26, %28 : vector<8x128xf32>
    %30 = arith.truncf %29 : vector<8x128xf32> to vector<8x128xbf16>
    %c0_21 = arith.constant 0 : index
    %c0_22 = arith.constant 0 : index
    %31 = vector.load %arg8[%c0_21, %c0_22] : memref<8x128xbf16, #tpu.memory_space<vmem>>, vector<8x128xbf16>
    tpu.vector_store %arg8[%c0_21, %c0_22], %30 {strides = array<i32>} : memref<8x128xbf16, #tpu.memory_space<vmem>>, vector<8x128xbf16>,
    return
  }
  func.func @transform_0(%arg0: i32) -> (i32, i32) {
    %c0_i32 = arith.constant 0 : i32
    %c0_i32_0 = arith.constant 0 : i32
    return %arg0, %c0_i32 : i32, i32
  }
  func.func @transform_1(%arg0: i32) -> (i32, i32) {
    %c0_i32 = arith.constant 0 : i32
    %c0_i32_0 = arith.constant 0 : i32
    %c0_i32_1 = arith.constant 0 : i32
    return %c0_i32, %c0_i32_0 : i32, i32
  }
  func.func @transform_2(%arg0: i32) -> (i32, i32) {
    %c0_i32 = arith.constant 0 : i32
    %c0_i32_0 = arith.constant 0 : i32
    %c0_i32_1 = arith.constant 0 : i32
    return %c0_i32, %c0_i32_0 : i32, i32
  }
  func.func @transform_3(%arg0: i32) -> (i32, i32, i32) {
    %c0_i32 = arith.constant 0 : i32
    %c0_i32_0 = arith.constant 0 : i32
    %c0_i32_1 = arith.constant 0 : i32
    %c0_i32_2 = arith.constant 0 : i32
    return %c0_i32, %c0_i32_0, %c0_i32_1 : i32, i32, i32
  }
  func.func @transform_4(%arg0: i32) -> (i32, i32, i32) {
    %c0_i32 = arith.constant 0 : i32
    %c0_i32_0 = arith.constant 0 : i32
    %c0_i32_1 = arith.constant 0 : i32
    %c0_i32_2 = arith.constant 0 : i32
    return %c0_i32, %c0_i32_0, %c0_i32_1 : i32, i32, i32
  }
  func.func @transform_5(%arg0: i32) -> (i32, i32) {
    %c0_i32 = arith.constant 0 : i32
    %c0_i32_0 = arith.constant 0 : i32
    %c0_i32_1 = arith.constant 0 : i32
    return %c0_i32, %c0_i32_0 : i32, i32
  }
  func.func @transform_6(%arg0: i32) -> (i32, i32) {
    %c0_i32 = arith.constant 0 : i32
    %c0_i32_0 = arith.constant 0 : i32
    %c0_i32_1 = arith.constant 0 : i32
    return %c0_i32, %c0_i32_0 : i32, i32
  }
  func.func @transform_7(%arg0: i32) -> (i32, i32) {
    %c0_i32 = arith.constant 0 : i32
    %c0_i32_0 = arith.constant 0 : i32
    return %arg0, %c0_i32 : i32, i32
  }
}

module attributes {stable_mosaic.version = 11 : i64} {
  func.func @kernel(%arg0: i32, %arg1: memref<8x128xbf16, #tpu.memory_space<vmem>>, %arg2: memref<128x128xbf16, #tpu.memory_space<vmem>>, %arg3: memref<1x128xf32, #tpu.memory_space<vmem>>, %arg4: memref<1x128x128xbf16, #tpu.memory_space<vmem>>, %arg5: memref<1x1x128xf32, #tpu.memory_space<vmem>>, %arg6: memref<128x128xbf16, #tpu.memory_space<vmem>>, %arg7: memref<1x128xf32, #tpu.memory_space<vmem>>, %arg8: memref<8x128xbf16, #tpu.memory_space<vmem>>) attributes {dimension_semantics = [#tpu.dimension_semantics<parallel>], iteration_bounds = array<i64: 1>, scalar_prefetch = 0 : i64, scratch_operands = 0 : i64, tpu.core_type = #tpu.core_type<tc>, window_params = [{transform_indices = @transform_0, window_bounds = array<i64: 8, 128>}, {pipeline_mode = #tpu.pipeline_mode<synchronous>, transform_indices = @transform_1, window_bounds = array<i64: 128, 128>}, {pipeline_mode = #tpu.pipeline_mode<synchronous>, transform_indices = @transform_2, window_bounds = array<i64: 1, 128>}, {pipeline_mode = #tpu.pipeline_mode<synchronous>, transform_indices = @transform_3, window_bounds = array<i64: 1, 128, 128>}, {pipeline_mode = #tpu.pipeline_mode<synchronous>, transform_indices = @transform_4, window_bounds = array<i64: 1, 1, 128>}, {pipeline_mode = #tpu.pipeline_mode<synchronous>, transform_indices = @transform_5, window_bounds = array<i64: 128, 128>}, {pipeline_mode = #tpu.pipeline_mode<synchronous>, transform_indices = @transform_6, window_bounds = array<i64: 1, 128>}, {transform_indices = @transform_7, window_bounds = array<i64: 8, 128>}]} {
    %c0 = arith.constant 0 : index
    %c0_0 = arith.constant 0 : index
    %0 = vector.load %arg1[%c0, %c0_0] : memref<8x128xbf16, #tpu.memory_space<vmem>>, vector<8x128xbf16>
    %c0_1 = arith.constant 0 : index
    %c0_2 = arith.constant 0 : index
    %1 = vector.load %arg2[%c0_1, %c0_2] : memref<128x128xbf16, #tpu.memory_space<vmem>>, vector<128x128xbf16>
    %cst = arith.constant dense<0.000000e+00> : vector<8x128xf32>
    %2 = tpu.matmul %0, %1, %cst {dimension_numbers = #tpu.dot_dimension_numbers<[1], [0], [0], [1], [0, 0, 1, 1], [], []>} : vector<8x128xbf16>, vector<128x128xbf16>, vector<8x128xf32> -> vector<8x128xf32>
    %c0_3 = arith.constant 0 : index
    %c0_4 = arith.constant 0 : index
    %3 = vector.load %arg3[%c0_3, %c0_4] : memref<1x128xf32, #tpu.memory_space<vmem>>, vector<1x128xf32>
    %4 = vector.broadcast %3 : vector<1x128xf32> to vector<8x128xf32>
    %5 = arith.addf %2, %4 : vector<8x128xf32>
    %cst_5 = arith.constant 0.000000e+00 : f32
    %6 = vector.broadcast %cst_5 : f32 to vector<8x128xf32>
    %7 = arith.cmpf oge, %5, %6 : vector<8x128xf32>
    %cst_6 = arith.constant 0.00999999977 : f32
    %8 = vector.broadcast %cst_6 : f32 to vector<8x128xf32>
    %9 = arith.mulf %8, %5 : vector<8x128xf32>
    %10 = arith.select %7, %5, %9 : vector<8x128xi1>, vector<8x128xf32>
    %11 = arith.truncf %10 : vector<8x128xf32> to vector<8x128xbf16>
    %c0_7 = arith.constant 0 : index
    %c0_8 = arith.constant 0 : index
    %c0_9 = arith.constant 0 : index
    %12 = vector.load %arg4[%c0_7, %c0_8, %c0_9] : memref<1x128x128xbf16, #tpu.memory_space<vmem>>, vector<1x128x128xbf16>
    %13 = vector.shape_cast %12 : vector<1x128x128xbf16> to vector<128x128xbf16>
    %cst_10 = arith.constant dense<0.000000e+00> : vector<8x128xf32>
    %14 = tpu.matmul %11, %13, %cst_10 {dimension_numbers = #tpu.dot_dimension_numbers<[1], [0], [0], [1], [0, 0, 1, 1], [], []>} : vector<8x128xbf16>, vector<128x128xbf16>, vector<8x128xf32> -> vector<8x128xf32>
    %c0_11 = arith.constant 0 : index
    %c0_12 = arith.constant 0 : index
    %c0_13 = arith.constant 0 : index
    %15 = vector.load %arg5[%c0_11, %c0_12, %c0_13] : memref<1x1x128xf32, #tpu.memory_space<vmem>>, vector<1x1x128xf32>
    %16 = vector.shape_cast %15 : vector<1x1x128xf32> to vector<1x128xf32>
    %17 = vector.broadcast %16 : vector<1x128xf32> to vector<8x128xf32>
    %18 = arith.addf %14, %17 : vector<8x128xf32>
    %cst_14 = arith.constant 0.000000e+00 : f32
    %19 = vector.broadcast %cst_14 : f32 to vector<8x128xf32>
    %20 = arith.cmpf oge, %18, %19 : vector<8x128xf32>
    %cst_15 = arith.constant 0.00999999977 : f32
    %21 = vector.broadcast %cst_15 : f32 to vector<8x128xf32>
    %22 = arith.mulf %21, %18 : vector<8x128xf32>
    %23 = arith.select %20, %18, %22 : vector<8x128xi1>, vector<8x128xf32>
    %24 = arith.truncf %23 : vector<8x128xf32> to vector<8x128xbf16>
    %c0_16 = arith.constant 0 : index
    %c0_17 = arith.constant 0 : index
    %25 = vector.load %arg6[%c0_16, %c0_17] : memref<128x128xbf16, #tpu.memory_space<vmem>>, vector<128x128xbf16>
    %cst_18 = arith.constant dense<0.000000e+00> : vector<8x128xf32>
    %26 = tpu.matmul %24, %25, %cst_18 {dimension_numbers = #tpu.dot_dimension_numbers<[1], [0], [0], [1], [0, 0, 1, 1], [], []>} : vector<8x128xbf16>, vector<128x128xbf16>, vector<8x128xf32> -> vector<8x128xf32>
    %c0_19 = arith.constant 0 : index
    %c0_20 = arith.constant 0 : index
    %27 = vector.load %arg7[%c0_19, %c0_20] : memref<1x128xf32, #tpu.memory_space<vmem>>, vector<1x128xf32>
    %28 = vector.broadcast %27 : vector<1x128xf32> to vector<8x128xf32>
    %29 = arith.addf %26, %28 : vector<8x128xf32>
    %30 = arith.truncf %29 : vector<8x128xf32> to vector<8x128xbf16>
    %c0_21 = arith.constant 0 : index
    %c0_22 = arith.constant 0 : index
    %31 = vector.load %arg8[%c0_21, %c0_22] : memref<8x128xbf16, #tpu.memory_space<vmem>>, vector<8x128xbf16>
    tpu.vector_store %arg8[%c0_21, %c0_22], %30 {strides = array<i32>} : memref<8x128xbf16, #tpu.memory_space<vmem>>, vector<8x128xbf16>,
    return
  }
  func.func @transform_0(%arg0: i32) -> (i32, i32) {
    %c0_i32 = arith.constant 0 : i32
    %c0_i32_0 = arith.constant 0 : i32
    return %arg0, %c0_i32 : i32, i32
  }
  func.func @transform_1(%arg0: i32) -> (i32, i32) {
    %c0_i32 = arith.constant 0 : i32
    %c0_i32_0 = arith.constant 0 : i32
    %c0_i32_1 = arith.constant 0 : i32
    return %c0_i32, %c0_i32_0 : i32, i32
  }
  func.func @transform_2(%arg0: i32) -> (i32, i32) {
    %c0_i32 = arith.constant 0 : i32
    %c0_i32_0 = arith.constant 0 : i32
    %c0_i32_1 = arith.constant 0 : i32
    return %c0_i32, %c0_i32_0 : i32, i32
  }
  func.func @transform_3(%arg0: i32) -> (i32, i32, i32) {
    %c0_i32 = arith.constant 0 : i32
    %c0_i32_0 = arith.constant 0 : i32
    %c0_i32_1 = arith.constant 0 : i32
    %c0_i32_2 = arith.constant 0 : i32
    return %c0_i32, %c0_i32_0, %c0_i32_1 : i32, i32, i32
  }
  func.func @transform_4(%arg0: i32) -> (i32, i32, i32) {
    %c0_i32 = arith.constant 0 : i32
    %c0_i32_0 = arith.constant 0 : i32
    %c0_i32_1 = arith.constant 0 : i32
    %c0_i32_2 = arith.constant 0 : i32
    return %c0_i32, %c0_i32_0, %c0_i32_1 : i32, i32, i32
  }
  func.func @transform_5(%arg0: i32) -> (i32, i32) {
    %c0_i32 = arith.constant 0 : i32
    %c0_i32_0 = arith.constant 0 : i32
    %c0_i32_1 = arith.constant 0 : i32
    return %c0_i32, %c0_i32_0 : i32, i32
  }
  func.func @transform_6(%arg0: i32) -> (i32, i32) {
    %c0_i32 = arith.constant 0 : i32
    %c0_i32_0 = arith.constant 0 : i32
    %c0_i32_1 = arith.constant 0 : i32
    return %c0_i32, %c0_i32_0 : i32, i32
  }
  func.func @transform_7(%arg0: i32) -> (i32, i32) {
    %c0_i32 = arith.constant 0 : i32
    %c0_i32_0 = arith.constant 0 : i32
    return %arg0, %c0_i32 : i32, i32
  }
}

</mosaic_0001>

<llo_original>
// kernel: tpu_custom_call.1
$region0: #{tpu_custom_call.1}
  #allocation0 [shape = 'u32[]', space=smem, size = 0x4, offset = 0x4, fixed_abs, tag = 'smem constant byte address 0x4 - core index']
  #allocation1 [shape = 'u32[144,128]{1,0:T(1,128)}', space=vmem, size = 0x12000, scoped, tag = 'internal scratch']
  %s0 = inlined_call_operand.hbm [shape: bf16[8,128], index: 0, kind: input, shape index: {}]
  %s1 = inlined_call_operand.hbm [shape: bf16[128,128], index: 1, kind: input, shape index: {}]
  %s2 = inlined_call_operand.vmem [shape: f32[1,128], index: 2, kind: input, shape index: {}]
  %s3 = inlined_call_operand.hbm [shape: bf16[1,128,128], index: 3, kind: input, shape index: {}]
  %s4 = inlined_call_operand.vmem [shape: f32[1,1,128], index: 4, kind: input, shape index: {}]
  %s5 = inlined_call_operand.hbm [shape: bf16[128,128], index: 5, kind: input, shape index: {}]
  %s6 = inlined_call_operand.vmem [shape: f32[1,128], index: 6, kind: input, shape index: {}]
  %s7 = inlined_call_operand.hbm [shape: bf16[8,128], index: 7, kind: output, shape index: {}]
  %s8 = sld [smem:[#allocation0]]
  $region54: #{tpu_custom_call.1} parent=0
    _
  %s10 = ssub.s32 1, %s8
  %s11 = scalar_select 0, %s10, %s8
  $region1: #{tpu_custom_call.1} parent=0
    #allocation2 [shape = 'u8[2048]{0}', space=vmem, size = 0x800, scoped, tag = 'input window, operand 0, single buffered']
    #allocation3 [shape = 's32[1]{0}', space=sflag, size = 0x4, scoped, tag = 'scoped memory for tpu_custom_call.1']
    #allocation4 [shape = 's32[1]{0}', space=sflag, size = 0x4, scoped, tag = 'scoped memory for tpu_custom_call.1']
    #allocation5 [shape = 'u8[32768]{0}', space=vmem, size = 0x8000, scoped, tag = 'input window, operand 1, single buffered']
    #allocation6 [shape = 's32[1]{0}', space=sflag, size = 0x4, scoped, tag = 'scoped memory for tpu_custom_call.1']
    #allocation7 [shape = 'u8[32768]{0}', space=vmem, size = 0x8000, scoped, tag = 'input window, operand 3, single buffered']
    #allocation8 [shape = 'u8[32768]{0}', space=vmem, size = 0x8000, scoped, tag = 'input window, operand 5, single buffered']
    #allocation9 [shape = 's32[1]{0}', space=sflag, size = 0x4, scoped, tag = 'scoped memory for tpu_custom_call.1']
    #allocation10 [shape = 'u8[2048]{0}', space=vmem, size = 0x800, scoped, tag = 'output window, operand 0, single buffered']
    %12 = vsyncpa [#allocation3], 0
    %13 = vsyncpa [#allocation6], 0
    %14 = vsyncpa [#allocation9], 0
    %15 = vsyncpa [#allocation4], 0
    // Predicated region
    $region2: #{tpu_custom_call.1} parent=1 // pred_check
      _
    $region3: #{tpu_custom_call.1} parent=1 // pred_check_branch
      %17 = sbr.rel (0) target = $region5
    $region4: #{tpu_custom_call.1} parent=1 // pred_region
      %s19 = ssub.s32 64, 64
      %20 = vsyncadd [#allocation3], %s19
      %s22 = sshll.u32 [#allocation2], 4
      %s23 = int_to_ptr.vmem [resolvable:$true] %s22
      %25 = dma.hbm_to_vmem [thread:$0]  %s0, 64, %s23, [#allocation3]
    $region5: #{tpu_custom_call.1} parent=1 // pred_fallthru
      _
    // Predicated region
    $region6: #{tpu_custom_call.1} parent=1 // pred_check
      _
    $region7: #{tpu_custom_call.1} parent=1 // pred_check_branch
      %27 = sbr.rel (0) target = $region9
    $region8: #{tpu_custom_call.1} parent=1 // pred_region
      %s29 = ssub.s32 1024, 1024
      %30 = vsyncadd [#allocation6], %s29
      %s31 = sshll.u32 [#allocation5], 4
      %s32 = int_to_ptr.vmem [resolvable:$true] %s31
      %37 = dma.hbm_to_vmem [thread:$0]  %s1, 1024, %s32, [#allocation6], 64, 64, 4
    $region9: #{tpu_custom_call.1} parent=1 // pred_fallthru
      _
    // Predicated region
    $region10: #{tpu_custom_call.1} parent=1 // pred_check
      _
    $region11: #{tpu_custom_call.1} parent=1 // pred_check_branch
      %39 = sbr.rel (0) target = $region13
    $region12: #{tpu_custom_call.1} parent=1 // pred_region
      _
    $region13: #{tpu_custom_call.1} parent=1 // pred_fallthru
      _
    // Predicated region
    $region14: #{tpu_custom_call.1} parent=1 // pred_check
      _
    $region15: #{tpu_custom_call.1} parent=1 // pred_check_branch
      %41 = sbr.rel (0) target = $region17
    $region16: #{tpu_custom_call.1} parent=1 // pred_region
      %s43 = ssub.s32 1024, 1024
      %44 = vsyncadd [#allocation6], %s43
      %s45 = sshll.u32 [#allocation7], 4
      %s46 = int_to_ptr.vmem [resolvable:$true] %s45
      %51 = dma.hbm_to_vmem [thread:$0]  %s3, 1024, %s46, [#allocation6], 64, 64, 4
    $region17: #{tpu_custom_call.1} parent=1 // pred_fallthru
      _
    // Predicated region
    $region18: #{tpu_custom_call.1} parent=1 // pred_check
      _
    $region19: #{tpu_custom_call.1} parent=1 // pred_check_branch
      %53 = sbr.rel (0) target = $region21
    $region20: #{tpu_custom_call.1} parent=1 // pred_region
      _
    $region21: #{tpu_custom_call.1} parent=1 // pred_fallthru
      _
    // Predicated region
    $region22: #{tpu_custom_call.1} parent=1 // pred_check
      _
    $region23: #{tpu_custom_call.1} parent=1 // pred_check_branch
      %55 = sbr.rel (0) target = $region25
    $region24: #{tpu_custom_call.1} parent=1 // pred_region
      %s57 = ssub.s32 1024, 1024
      %58 = vsyncadd [#allocation9], %s57
      %s59 = sshll.u32 [#allocation8], 4
      %s60 = int_to_ptr.vmem [resolvable:$true] %s59
      %65 = dma.hbm_to_vmem [thread:$0]  %s5, 1024, %s60, [#allocation9], 64, 64, 4
    $region25: #{tpu_custom_call.1} parent=1 // pred_fallthru
      _
    // Predicated region
    $region26: #{tpu_custom_call.1} parent=1 // pred_check
      _
    $region27: #{tpu_custom_call.1} parent=1 // pred_check_branch
      %67 = sbr.rel (0) target = $region29
    $region28: #{tpu_custom_call.1} parent=1 // pred_region
      _
    $region29: #{tpu_custom_call.1} parent=1 // pred_fallthru
      _
    // Predicated region
    $region30: #{tpu_custom_call.1} parent=1 // pred_check
      _
    $region31: #{tpu_custom_call.1} parent=1 // pred_check_branch
      %69 = sbr.rel (0) target = $region33
    $region32: #{tpu_custom_call.1} parent=1 // pred_region
      %70 = dma.done [#allocation3], 64
    $region33: #{tpu_custom_call.1} parent=1 // pred_fallthru
      _
    // Predicated region
    $region34: #{tpu_custom_call.1} parent=1 // pred_check
      _
    $region35: #{tpu_custom_call.1} parent=1 // pred_check_branch
      %72 = sbr.rel (0) target = $region37
    $region36: #{tpu_custom_call.1} parent=1 // pred_region
      %73 = dma.done [#allocation6], 1024
    $region37: #{tpu_custom_call.1} parent=1 // pred_fallthru
      _
    // Predicated region
    $region38: #{tpu_custom_call.1} parent=1 // pred_check
      _
    $region39: #{tpu_custom_call.1} parent=1 // pred_check_branch
      %75 = sbr.rel (0) target = $region41
    $region40: #{tpu_custom_call.1} parent=1 // pred_region
      %76 = dma.done [#allocation6], 1024
    $region41: #{tpu_custom_call.1} parent=1 // pred_fallthru
      _
    // Predicated region
    $region42: #{tpu_custom_call.1} parent=1 // pred_check
      _
    $region43: #{tpu_custom_call.1} parent=1 // pred_check_branch
      %78 = sbr.rel (0) target = $region45
    $region44: #{tpu_custom_call.1} parent=1 // pred_region
      %79 = dma.done [#allocation9], 1024
    $region45: #{tpu_custom_call.1} parent=1 // pred_fallthru
      _
    %v81 = vld [vmem:[#allocation2] sm:$0xf]
    %v82 = vld [vmem:[#allocation5] sm:$0xf]
    %v83 = vld [vmem:[#allocation5 + $0x4] sm:$0xf]
    %v84 = vld [vmem:[#allocation5 + $0x8] sm:$0xf]
    %v85 = vld [vmem:[#allocation5 + $0xc] sm:$0xf]
    %v86 = vld [vmem:[#allocation5 + $0x10] sm:$0xf]
    %v87 = vld [vmem:[#allocation5 + $0x14] sm:$0xf]
    %v88 = vld [vmem:[#allocation5 + $0x18] sm:$0xf]
    %v89 = vld [vmem:[#allocation5 + $0x1c] sm:$0xf]
    %v90 = vld [vmem:[#allocation5 + $0x20] sm:$0xf]
    %v91 = vld [vmem:[#allocation5 + $0x24] sm:$0xf]
    %v92 = vld [vmem:[#allocation5 + $0x28] sm:$0xf]
    %v93 = vld [vmem:[#allocation5 + $0x2c] sm:$0xf]
    %v94 = vld [vmem:[#allocation5 + $0x30] sm:$0xf]
    %v95 = vld [vmem:[#allocation5 + $0x34] sm:$0xf]
    %v96 = vld [vmem:[#allocation5 + $0x38] sm:$0xf]
    %v97 = vld [vmem:[#allocation5 + $0x3c] sm:$0xf]
    %v98 = vld [vmem:[%s2] sm:$0x1]
    %v100 = vlaneseq
    %v101 = vshrl.u32 %v100, 7
    %v102 = vsub.s32 0, %v101
    %v103 = vrot.slane %v98, %v102
    %v121 = vunpack.c.l.b16 %v82
    %v122 = vunpack.c.l.b16 %v83
    %v123 = vunpack.c.l.b16 %v84
    %v124 = vunpack.c.l.b16 %v85
    %v125 = vunpack.c.l.b16 %v86
    %v126 = vunpack.c.l.b16 %v87
    %v127 = vunpack.c.l.b16 %v88
    %v128 = vunpack.c.l.b16 %v89
    %v129 = vunpack.c.l.b16 %v90
    %v130 = vunpack.c.l.b16 %v91
    %v131 = vunpack.c.l.b16 %v92
    %v132 = vunpack.c.l.b16 %v93
    %v133 = vunpack.c.l.b16 %v94
    %v134 = vunpack.c.l.b16 %v95
    %v135 = vunpack.c.l.b16 %v96
    %v136 = vunpack.c.l.b16 %v97
    %v137 = vpack.c.b16 %v122, %v121
    %v138 = vpack.c.b16 %v124, %v123
    %v139 = vpack.c.b16 %v126, %v125
    %v140 = vpack.c.b16 %v128, %v127
    %v141 = vpack.c.b16 %v130, %v129
    %v142 = vpack.c.b16 %v132, %v131
    %v143 = vpack.c.b16 %v134, %v133
    %v144 = vpack.c.b16 %v136, %v135
    %153 = vmatprep.subr.bf16.mxu0 0
    %154 = vmatpush1.bf16.msra.mxu0 %v144
    %155 = vmatprep.subr.bf16.mxu0 0
    %156 = vmatpush1.bf16.msra.mxu0 %v143
    %157 = vmatprep.subr.bf16.mxu0 0
    %158 = vmatpush1.bf16.msra.mxu0 %v142
    %159 = vmatprep.subr.bf16.mxu0 0
    %160 = vmatpush1.bf16.msra.mxu0 %v141
    %161 = vmatprep.subr.bf16.mxu0 0
    %162 = vmatpush1.bf16.msra.mxu0 %v140
    %163 = vmatprep.subr.bf16.mxu0 0
    %164 = vmatpush1.bf16.msra.mxu0 %v139
    %165 = vmatprep.subr.bf16.mxu0 0
    %166 = vmatpush1.bf16.msra.mxu0 %v138
    %167 = vmatprep.subr.bf16.mxu0 0
    %168 = vmatpush1.bf16.msra.mxu0 %v137
    %169 = vmatprep.subr.bf16.mxu0 0
    %170 = vmatpush2.bf16.msra.mxu0 0
    %171 = vmatprep.subr.bf16.mxu0 0
    %172 = vmatpush2.bf16.msra.mxu0 0
    %173 = vmatprep.subr.bf16.mxu0 0
    %174 = vmatpush2.bf16.msra.mxu0 0
    %175 = vmatprep.subr.bf16.mxu0 0
    %176 = vmatpush2.bf16.msra.mxu0 0
    %177 = vmatprep.subr.bf16.mxu0 0
    %178 = vmatpush2.bf16.msra.mxu0 0
    %179 = vmatprep.subr.bf16.mxu0 0
    %180 = vmatpush2.bf16.msra.mxu0 0
    %181 = vmatprep.subr.bf16.mxu0 0
    %182 = vmatpush2.bf16.msra.mxu0 0
    %183 = vmatprep.subr.bf16.mxu0 0
    %184 = vmatpush2.bf16.msra.mxu0 0
    %185 = vmatprep.mubr.bf16.mxu0 0
    %186 = vmatmul.mubr.bf16.gmra.mxu0 %v81
    %v187 = vpop.f32.mrf.mxu0
    %v188 = vadd.f32 %v103, %v187
    %v189 = vpop.f32.mrf.mxu0
    %v190 = vpop.f32.mrf.mxu0
    %v191 = vpop.f32.mrf.mxu0
    %192 = vdwg.mxu0
    %vm193 = vcmp.ge.f32.partialorder %v188, 0.0
    %v194 = vmul.f32 %v188, 0.01
    %v195 = vsel %vm193, %v188, %v194
    %v196 = vpack.c.bf16 %v195, %v195
    %v197 = vld [vmem:[#allocation7] sm:$0xf]
    %v198 = vld [vmem:[#allocation7 + $0x4] sm:$0xf]
    %v199 = vld [vmem:[#allocation7 + $0x8] sm:$0xf]
    %v200 = vld [vmem:[#allocation7 + $0xc] sm:$0xf]
    %v201 = vld [vmem:[#allocation7 + $0x10] sm:$0xf]
    %v202 = vld [vmem:[#allocation7 + $0x14] sm:$0xf]
    %v203 = vld [vmem:[#allocation7 + $0x18] sm:$0xf]
    %v204 = vld [vmem:[#allocation7 + $0x1c] sm:$0xf]
    %v205 = vld [vmem:[#allocation7 + $0x20] sm:$0xf]
    %v206 = vld [vmem:[#allocation7 + $0x24] sm:$0xf]
    %v207 = vld [vmem:[#allocation7 + $0x28] sm:$0xf]
    %v208 = vld [vmem:[#allocation7 + $0x2c] sm:$0xf]
    %v209 = vld [vmem:[#allocation7 + $0x30] sm:$0xf]
    %v210 = vld [vmem:[#allocation7 + $0x34] sm:$0xf]
    %v211 = vld [vmem:[#allocation7 + $0x38] sm:$0xf]
    %v212 = vld [vmem:[#allocation7 + $0x3c] sm:$0xf]
    %v213 = vld [vmem:[%s4] sm:$0x1]
    %v215 = vlaneseq
    %v216 = vshrl.u32 %v215, 7
    %v217 = vsub.s32 0, %v216
    %v218 = vrot.slane %v213, %v217
    %v236 = vunpack.c.l.b16 %v197
    %v237 = vunpack.c.l.b16 %v198
    %v238 = vunpack.c.l.b16 %v199
    %v239 = vunpack.c.l.b16 %v200
    %v240 = vunpack.c.l.b16 %v201
    %v241 = vunpack.c.l.b16 %v202
    %v242 = vunpack.c.l.b16 %v203
    %v243 = vunpack.c.l.b16 %v204
    %v244 = vunpack.c.l.b16 %v205
    %v245 = vunpack.c.l.b16 %v206
    %v246 = vunpack.c.l.b16 %v207
    %v247 = vunpack.c.l.b16 %v208
    %v248 = vunpack.c.l.b16 %v209
    %v249 = vunpack.c.l.b16 %v210
    %v250 = vunpack.c.l.b16 %v211
    %v251 = vunpack.c.l.b16 %v212
    %v252 = vpack.c.b16 %v237, %v236
    %v253 = vpack.c.b16 %v239, %v238
    %v254 = vpack.c.b16 %v241, %v240
    %v255 = vpack.c.b16 %v243, %v242
    %v256 = vpack.c.b16 %v245, %v244
    %v257 = vpack.c.b16 %v247, %v246
    %v258 = vpack.c.b16 %v249, %v248
    %v259 = vpack.c.b16 %v251, %v250
    %268 = vmatprep.subr.bf16.mxu0 0
    %269 = vmatpush1.bf16.msra.mxu0 %v259
    %270 = vmatprep.subr.bf16.mxu0 0
    %271 = vmatpush1.bf16.msra.mxu0 %v258
    %272 = vmatprep.subr.bf16.mxu0 0
    %273 = vmatpush1.bf16.msra.mxu0 %v257
    %274 = vmatprep.subr.bf16.mxu0 0
    %275 = vmatpush1.bf16.msra.mxu0 %v256
    %276 = vmatprep.subr.bf16.mxu0 0
    %277 = vmatpush1.bf16.msra.mxu0 %v255
    %278 = vmatprep.subr.bf16.mxu0 0
    %279 = vmatpush1.bf16.msra.mxu0 %v254
    %280 = vmatprep.subr.bf16.mxu0 0
    %281 = vmatpush1.bf16.msra.mxu0 %v253
    %282 = vmatprep.subr.bf16.mxu0 0
    %283 = vmatpush1.bf16.msra.mxu0 %v252
    %284 = vmatprep.subr.bf16.mxu0 0
    %285 = vmatpush2.bf16.msra.mxu0 0
    %286 = vmatprep.subr.bf16.mxu0 0
    %287 = vmatpush2.bf16.msra.mxu0 0
    %288 = vmatprep.subr.bf16.mxu0 0
    %289 = vmatpush2.bf16.msra.mxu0 0
    %290 = vmatprep.subr.bf16.mxu0 0
    %291 = vmatpush2.bf16.msra.mxu0 0
    %292 = vmatprep.subr.bf16.mxu0 0
    %293 = vmatpush2.bf16.msra.mxu0 0
    %294 = vmatprep.subr.bf16.mxu0 0
    %295 = vmatpush2.bf16.msra.mxu0 0
    %296 = vmatprep.subr.bf16.mxu0 0
    %297 = vmatpush2.bf16.msra.mxu0 0
    %298 = vmatprep.subr.bf16.mxu0 0
    %299 = vmatpush2.bf16.msra.mxu0 0
    %300 = vmatprep.mubr.bf16.mxu0 0
    %301 = vmatmul.mubr.bf16.gmra.mxu0 %v196
    %v302 = vpop.f32.mrf.mxu0
    %v303 = vadd.f32 %v218, %v302
    %v304 = vpop.f32.mrf.mxu0
    %v305 = vpop.f32.mrf.mxu0
    %v306 = vpop.f32.mrf.mxu0
    %307 = vdwg.mxu0
    %vm308 = vcmp.ge.f32.partialorder %v303, 0.0
    %v309 = vmul.f32 %v303, 0.01
    %v310 = vsel %vm308, %v303, %v309
    %v311 = vpack.c.bf16 %v310, %v310
    %v312 = vld [vmem:[#allocation8] sm:$0xf]
    %v313 = vld [vmem:[#allocation8 + $0x4] sm:$0xf]
    %v314 = vld [vmem:[#allocation8 + $0x8] sm:$0xf]
    %v315 = vld [vmem:[#allocation8 + $0xc] sm:$0xf]
    %v316 = vld [vmem:[#allocation8 + $0x10] sm:$0xf]
    %v317 = vld [vmem:[#allocation8 + $0x14] sm:$0xf]
    %v318 = vld [vmem:[#allocation8 + $0x18] sm:$0xf]
    %v319 = vld [vmem:[#allocation8 + $0x1c] sm:$0xf]
    %v320 = vld [vmem:[#allocation8 + $0x20] sm:$0xf]
    %v321 = vld [vmem:[#allocation8 + $0x24] sm:$0xf]
    %v322 = vld [vmem:[#allocation8 + $0x28] sm:$0xf]
    %v323 = vld [vmem:[#allocation8 + $0x2c] sm:$0xf]
    %v324 = vld [vmem:[#allocation8 + $0x30] sm:$0xf]
    %v325 = vld [vmem:[#allocation8 + $0x34] sm:$0xf]
    %v326 = vld [vmem:[#allocation8 + $0x38] sm:$0xf]
    %v327 = vld [vmem:[#allocation8 + $0x3c] sm:$0xf]
    %v328 = vld [vmem:[%s6] sm:$0x1]
    %v330 = vlaneseq
    %v331 = vshrl.u32 %v330, 7
    %v332 = vsub.s32 0, %v331
    %v333 = vrot.slane %v328, %v332
    %v351 = vunpack.c.l.b16 %v312
    %v352 = vunpack.c.l.b16 %v313
    %v353 = vunpack.c.l.b16 %v314
    %v354 = vunpack.c.l.b16 %v315
    %v355 = vunpack.c.l.b16 %v316
    %v356 = vunpack.c.l.b16 %v317
    %v357 = vunpack.c.l.b16 %v318
    %v358 = vunpack.c.l.b16 %v319
    %v359 = vunpack.c.l.b16 %v320
    %v360 = vunpack.c.l.b16 %v321
    %v361 = vunpack.c.l.b16 %v322
    %v362 = vunpack.c.l.b16 %v323
    %v363 = vunpack.c.l.b16 %v324
    %v364 = vunpack.c.l.b16 %v325
    %v365 = vunpack.c.l.b16 %v326
    %v366 = vunpack.c.l.b16 %v327
    %v367 = vpack.c.b16 %v352, %v351
    %v368 = vpack.c.b16 %v354, %v353
    %v369 = vpack.c.b16 %v356, %v355
    %v370 = vpack.c.b16 %v358, %v357
    %v371 = vpack.c.b16 %v360, %v359
    %v372 = vpack.c.b16 %v362, %v361
    %v373 = vpack.c.b16 %v364, %v363
    %v374 = vpack.c.b16 %v366, %v365
    %383 = vmatprep.subr.bf16.mxu0 0
    %384 = vmatpush1.bf16.msra.mxu0 %v374
    %385 = vmatprep.subr.bf16.mxu0 0
    %386 = vmatpush1.bf16.msra.mxu0 %v373
    %387 = vmatprep.subr.bf16.mxu0 0
    %388 = vmatpush1.bf16.msra.mxu0 %v372
    %389 = vmatprep.subr.bf16.mxu0 0
    %390 = vmatpush1.bf16.msra.mxu0 %v371
    %391 = vmatprep.subr.bf16.mxu0 0
    %392 = vmatpush1.bf16.msra.mxu0 %v370
    %393 = vmatprep.subr.bf16.mxu0 0
    %394 = vmatpush1.bf16.msra.mxu0 %v369
    %395 = vmatprep.subr.bf16.mxu0 0
    %396 = vmatpush1.bf16.msra.mxu0 %v368
    %397 = vmatprep.subr.bf16.mxu0 0
    %398 = vmatpush1.bf16.msra.mxu0 %v367
    %399 = vmatprep.subr.bf16.mxu0 0
    %400 = vmatpush2.bf16.msra.mxu0 0
    %401 = vmatprep.subr.bf16.mxu0 0
    %402 = vmatpush2.bf16.msra.mxu0 0
    %403 = vmatprep.subr.bf16.mxu0 0
    %404 = vmatpush2.bf16.msra.mxu0 0
    %405 = vmatprep.subr.bf16.mxu0 0
    %406 = vmatpush2.bf16.msra.mxu0 0
    %407 = vmatprep.subr.bf16.mxu0 0
    %408 = vmatpush2.bf16.msra.mxu0 0
    %409 = vmatprep.subr.bf16.mxu0 0
    %410 = vmatpush2.bf16.msra.mxu0 0
    %411 = vmatprep.subr.bf16.mxu0 0
    %412 = vmatpush2.bf16.msra.mxu0 0
    %413 = vmatprep.subr.bf16.mxu0 0
    %414 = vmatpush2.bf16.msra.mxu0 0
    %415 = vmatprep.mubr.bf16.mxu0 0
    %416 = vmatmul.mubr.bf16.gmra.mxu0 %v311
    %v417 = vpop.f32.mrf.mxu0
    %v418 = vadd.f32 %v333, %v417
    %v419 = vpop.f32.mrf.mxu0
    %v420 = vpop.f32.mrf.mxu0
    %v421 = vpop.f32.mrf.mxu0
    %422 = vdwg.mxu0
    %v423 = vpack.c.bf16 %v418, %v418
    %424 = vst [vmem:[#allocation10] sm:$0xf] %v423
    // Predicated region
    $region46: #{tpu_custom_call.1} parent=1 // pred_check
      _
    $region47: #{tpu_custom_call.1} parent=1 // pred_check_branch
      %426 = sbr.rel (0) target = $region49
    $region48: #{tpu_custom_call.1} parent=1 // pred_region
      %s428 = ssub.s32 64, 64
      %429 = vsyncadd [#allocation4], %s428
      %s431 = sshll.u32 [#allocation10], 4
      %s432 = int_to_ptr.vmem [resolvable:$true] %s431
      %434 = dma.vmem_to_hbm [thread:$0]  %s432, 64, %s7, [#allocation4]
    $region49: #{tpu_custom_call.1} parent=1 // pred_fallthru
      _
    // Predicated region
    $region50: #{tpu_custom_call.1} parent=1 // pred_check
      _
    $region51: #{tpu_custom_call.1} parent=1 // pred_check_branch
      %436 = sbr.rel (0) target = $region53
    $region52: #{tpu_custom_call.1} parent=1 // pred_region
      %437 = dma.done [#allocation4], 64
    $region53: #{tpu_custom_call.1} parent=1 // pred_fallthru
      _
    %438 = vsyncpa [#allocation3], 1
    %439 = vsyncpa [#allocation6], 1
    %440 = vsyncpa [#allocation9], 1
    %441 = vsyncpa [#allocation4], 1

// kernel: tpu_custom_call.1
$region0: #{tpu_custom_call.1}
  #allocation0 [shape = 'u32[]', space=smem, size = 0x4, offset = 0x4, fixed_abs, tag = 'smem constant byte address 0x4 - core index']
  #allocation1 [shape = 'u32[144,128]{1,0:T(1,128)}', space=vmem, size = 0x12000, scoped, tag = 'internal scratch']
  %s0 = inlined_call_operand.hbm [shape: bf16[8,128], index: 0, kind: input, shape index: {}]
  %s1 = inlined_call_operand.hbm [shape: bf16[128,128], index: 1, kind: input, shape index: {}]
  %s2 = inlined_call_operand.vmem [shape: f32[1,128], index: 2, kind: input, shape index: {}]
  %s3 = inlined_call_operand.hbm [shape: bf16[1,128,128], index: 3, kind: input, shape index: {}]
  %s4 = inlined_call_operand.vmem [shape: f32[1,1,128], index: 4, kind: input, shape index: {}]
  %s5 = inlined_call_operand.hbm [shape: bf16[128,128], index: 5, kind: input, shape index: {}]
  %s6 = inlined_call_operand.vmem [shape: f32[1,128], index: 6, kind: input, shape index: {}]
  %s7 = inlined_call_operand.hbm [shape: bf16[8,128], index: 7, kind: output, shape index: {}]
  %s8 = sld [smem:[#allocation0]]
  $region54: #{tpu_custom_call.1} parent=0
    _
  %s10 = ssub.s32 1, %s8
  %s11 = scalar_select 0, %s10, %s8
  $region1: #{tpu_custom_call.1} parent=0
    #allocation2 [shape = 'u8[2048]{0}', space=vmem, size = 0x800, scoped, tag = 'input window, operand 0, single buffered']
    #allocation3 [shape = 's32[1]{0}', space=sflag, size = 0x4, scoped, tag = 'scoped memory for tpu_custom_call.1']
    #allocation4 [shape = 's32[1]{0}', space=sflag, size = 0x4, scoped, tag = 'scoped memory for tpu_custom_call.1']
    #allocation5 [shape = 'u8[32768]{0}', space=vmem, size = 0x8000, scoped, tag = 'input window, operand 1, single buffered']
    #allocation6 [shape = 's32[1]{0}', space=sflag, size = 0x4, scoped, tag = 'scoped memory for tpu_custom_call.1']
    #allocation7 [shape = 'u8[32768]{0}', space=vmem, size = 0x8000, scoped, tag = 'input window, operand 3, single buffered']
    #allocation8 [shape = 'u8[32768]{0}', space=vmem, size = 0x8000, scoped, tag = 'input window, operand 5, single buffered']
    #allocation9 [shape = 's32[1]{0}', space=sflag, size = 0x4, scoped, tag = 'scoped memory for tpu_custom_call.1']
    #allocation10 [shape = 'u8[2048]{0}', space=vmem, size = 0x800, scoped, tag = 'output window, operand 0, single buffered']
    %12 = vsyncpa [#allocation3], 0
    %13 = vsyncpa [#allocation6], 0
    %14 = vsyncpa [#allocation9], 0
    %15 = vsyncpa [#allocation4], 0
    // Predicated region
    $region2: #{tpu_custom_call.1} parent=1 // pred_check
      _
    $region3: #{tpu_custom_call.1} parent=1 // pred_check_branch
      %17 = sbr.rel (0) target = $region5
    $region4: #{tpu_custom_call.1} parent=1 // pred_region
      %s19 = ssub.s32 64, 64
      %20 = vsyncadd [#allocation3], %s19
      %s22 = sshll.u32 [#allocation2], 4
      %s23 = int_to_ptr.vmem [resolvable:$true] %s22
      %25 = dma.hbm_to_vmem [thread:$0]  %s0, 64, %s23, [#allocation3]
    $region5: #{tpu_custom_call.1} parent=1 // pred_fallthru
      _
    // Predicated region
    $region6: #{tpu_custom_call.1} parent=1 // pred_check
      _
    $region7: #{tpu_custom_call.1} parent=1 // pred_check_branch
      %27 = sbr.rel (0) target = $region9
    $region8: #{tpu_custom_call.1} parent=1 // pred_region
      %s29 = ssub.s32 1024, 1024
      %30 = vsyncadd [#allocation6], %s29
      %s31 = sshll.u32 [#allocation5], 4
      %s32 = int_to_ptr.vmem [resolvable:$true] %s31
      %37 = dma.hbm_to_vmem [thread:$0]  %s1, 1024, %s32, [#allocation6], 64, 64, 4
    $region9: #{tpu_custom_call.1} parent=1 // pred_fallthru
      _
    // Predicated region
    $region10: #{tpu_custom_call.1} parent=1 // pred_check
      _
    $region11: #{tpu_custom_call.1} parent=1 // pred_check_branch
      %39 = sbr.rel (0) target = $region13
    $region12: #{tpu_custom_call.1} parent=1 // pred_region
      _
    $region13: #{tpu_custom_call.1} parent=1 // pred_fallthru
      _
    // Predicated region
    $region14: #{tpu_custom_call.1} parent=1 // pred_check
      _
    $region15: #{tpu_custom_call.1} parent=1 // pred_check_branch
      %41 = sbr.rel (0) target = $region17
    $region16: #{tpu_custom_call.1} parent=1 // pred_region
      %s43 = ssub.s32 1024, 1024
      %44 = vsyncadd [#allocation6], %s43
      %s45 = sshll.u32 [#allocation7], 4
      %s46 = int_to_ptr.vmem [resolvable:$true] %s45
      %51 = dma.hbm_to_vmem [thread:$0]  %s3, 1024, %s46, [#allocation6], 64, 64, 4
    $region17: #{tpu_custom_call.1} parent=1 // pred_fallthru
      _
    // Predicated region
    $region18: #{tpu_custom_call.1} parent=1 // pred_check
      _
    $region19: #{tpu_custom_call.1} parent=1 // pred_check_branch
      %53 = sbr.rel (0) target = $region21
    $region20: #{tpu_custom_call.1} parent=1 // pred_region
      _
    $region21: #{tpu_custom_call.1} parent=1 // pred_fallthru
      _
    // Predicated region
    $region22: #{tpu_custom_call.1} parent=1 // pred_check
      _
    $region23: #{tpu_custom_call.1} parent=1 // pred_check_branch
      %55 = sbr.rel (0) target = $region25
    $region24: #{tpu_custom_call.1} parent=1 // pred_region
      %s57 = ssub.s32 1024, 1024
      %58 = vsyncadd [#allocation9], %s57
      %s59 = sshll.u32 [#allocation8], 4
      %s60 = int_to_ptr.vmem [resolvable:$true] %s59
      %65 = dma.hbm_to_vmem [thread:$0]  %s5, 1024, %s60, [#allocation9], 64, 64, 4
    $region25: #{tpu_custom_call.1} parent=1 // pred_fallthru
      _
    // Predicated region
    $region26: #{tpu_custom_call.1} parent=1 // pred_check
      _
    $region27: #{tpu_custom_call.1} parent=1 // pred_check_branch
      %67 = sbr.rel (0) target = $region29
    $region28: #{tpu_custom_call.1} parent=1 // pred_region
      _
    $region29: #{tpu_custom_call.1} parent=1 // pred_fallthru
      _
    // Predicated region
    $region30: #{tpu_custom_call.1} parent=1 // pred_check
      _
    $region31: #{tpu_custom_call.1} parent=1 // pred_check_branch
      %69 = sbr.rel (0) target = $region33
    $region32: #{tpu_custom_call.1} parent=1 // pred_region
      %70 = dma.done [#allocation3], 64
    $region33: #{tpu_custom_call.1} parent=1 // pred_fallthru
      _
    // Predicated region
    $region34: #{tpu_custom_call.1} parent=1 // pred_check
      _
    $region35: #{tpu_custom_call.1} parent=1 // pred_check_branch
      %72 = sbr.rel (0) target = $region37
    $region36: #{tpu_custom_call.1} parent=1 // pred_region
      %73 = dma.done [#allocation6], 1024
    $region37: #{tpu_custom_call.1} parent=1 // pred_fallthru
      _
    // Predicated region
    $region38: #{tpu_custom_call.1} parent=1 // pred_check
      _
    $region39: #{tpu_custom_call.1} parent=1 // pred_check_branch
      %75 = sbr.rel (0) target = $region41
    $region40: #{tpu_custom_call.1} parent=1 // pred_region
      %76 = dma.done [#allocation6], 1024
    $region41: #{tpu_custom_call.1} parent=1 // pred_fallthru
      _
    // Predicated region
    $region42: #{tpu_custom_call.1} parent=1 // pred_check
      _
    $region43: #{tpu_custom_call.1} parent=1 // pred_check_branch
      %78 = sbr.rel (0) target = $region45
    $region44: #{tpu_custom_call.1} parent=1 // pred_region
      %79 = dma.done [#allocation9], 1024
    $region45: #{tpu_custom_call.1} parent=1 // pred_fallthru
      _
    %v81 = vld [vmem:[#allocation2] sm:$0xf]
    %v82 = vld [vmem:[#allocation5] sm:$0xf]
    %v83 = vld [vmem:[#allocation5 + $0x4] sm:$0xf]
    %v84 = vld [vmem:[#allocation5 + $0x8] sm:$0xf]
    %v85 = vld [vmem:[#allocation5 + $0xc] sm:$0xf]
    %v86 = vld [vmem:[#allocation5 + $0x10] sm:$0xf]
    %v87 = vld [vmem:[#allocation5 + $0x14] sm:$0xf]
    %v88 = vld [vmem:[#allocation5 + $0x18] sm:$0xf]
    %v89 = vld [vmem:[#allocation5 + $0x1c] sm:$0xf]
    %v90 = vld [vmem:[#allocation5 + $0x20] sm:$0xf]
    %v91 = vld [vmem:[#allocation5 + $0x24] sm:$0xf]
    %v92 = vld [vmem:[#allocation5 + $0x28] sm:$0xf]
    %v93 = vld [vmem:[#allocation5 + $0x2c] sm:$0xf]
    %v94 = vld [vmem:[#allocation5 + $0x30] sm:$0xf]
    %v95 = vld [vmem:[#allocation5 + $0x34] sm:$0xf]
    %v96 = vld [vmem:[#allocation5 + $0x38] sm:$0xf]
    %v97 = vld [vmem:[#allocation5 + $0x3c] sm:$0xf]
    %v98 = vld [vmem:[%s2] sm:$0x1]
    %v100 = vlaneseq
    %v101 = vshrl.u32 %v100, 7
    %v102 = vsub.s32 0, %v101
    %v103 = vrot.slane %v98, %v102
    %v121 = vunpack.c.l.b16 %v82
    %v122 = vunpack.c.l.b16 %v83
    %v123 = vunpack.c.l.b16 %v84
    %v124 = vunpack.c.l.b16 %v85
    %v125 = vunpack.c.l.b16 %v86
    %v126 = vunpack.c.l.b16 %v87
    %v127 = vunpack.c.l.b16 %v88
    %v128 = vunpack.c.l.b16 %v89
    %v129 = vunpack.c.l.b16 %v90
    %v130 = vunpack.c.l.b16 %v91
    %v131 = vunpack.c.l.b16 %v92
    %v132 = vunpack.c.l.b16 %v93
    %v133 = vunpack.c.l.b16 %v94
    %v134 = vunpack.c.l.b16 %v95
    %v135 = vunpack.c.l.b16 %v96
    %v136 = vunpack.c.l.b16 %v97
    %v137 = vpack.c.b16 %v122, %v121
    %v138 = vpack.c.b16 %v124, %v123
    %v139 = vpack.c.b16 %v126, %v125
    %v140 = vpack.c.b16 %v128, %v127
    %v141 = vpack.c.b16 %v130, %v129
    %v142 = vpack.c.b16 %v132, %v131
    %v143 = vpack.c.b16 %v134, %v133
    %v144 = vpack.c.b16 %v136, %v135
    %153 = vmatprep.subr.bf16.mxu0 0
    %154 = vmatpush1.bf16.msra.mxu0 %v144
    %155 = vmatprep.subr.bf16.mxu0 0
    %156 = vmatpush1.bf16.msra.mxu0 %v143
    %157 = vmatprep.subr.bf16.mxu0 0
    %158 = vmatpush1.bf16.msra.mxu0 %v142
    %159 = vmatprep.subr.bf16.mxu0 0
    %160 = vmatpush1.bf16.msra.mxu0 %v141
    %161 = vmatprep.subr.bf16.mxu0 0
    %162 = vmatpush1.bf16.msra.mxu0 %v140
    %163 = vmatprep.subr.bf16.mxu0 0
    %164 = vmatpush1.bf16.msra.mxu0 %v139
    %165 = vmatprep.subr.bf16.mxu0 0
    %166 = vmatpush1.bf16.msra.mxu0 %v138
    %167 = vmatprep.subr.bf16.mxu0 0
    %168 = vmatpush1.bf16.msra.mxu0 %v137
    %169 = vmatprep.subr.bf16.mxu0 0
    %170 = vmatpush2.bf16.msra.mxu0 0
    %171 = vmatprep.subr.bf16.mxu0 0
    %172 = vmatpush2.bf16.msra.mxu0 0
    %173 = vmatprep.subr.bf16.mxu0 0
    %174 = vmatpush2.bf16.msra.mxu0 0
    %175 = vmatprep.subr.bf16.mxu0 0
    %176 = vmatpush2.bf16.msra.mxu0 0
    %177 = vmatprep.subr.bf16.mxu0 0
    %178 = vmatpush2.bf16.msra.mxu0 0
    %179 = vmatprep.subr.bf16.mxu0 0
    %180 = vmatpush2.bf16.msra.mxu0 0
    %181 = vmatprep.subr.bf16.mxu0 0
    %182 = vmatpush2.bf16.msra.mxu0 0
    %183 = vmatprep.subr.bf16.mxu0 0
    %184 = vmatpush2.bf16.msra.mxu0 0
    %185 = vmatprep.mubr.bf16.mxu0 0
    %186 = vmatmul.mubr.bf16.gmra.mxu0 %v81
    %v187 = vpop.f32.mrf.mxu0
    %v188 = vadd.f32 %v103, %v187
    %v189 = vpop.f32.mrf.mxu0
    %v190 = vpop.f32.mrf.mxu0
    %v191 = vpop.f32.mrf.mxu0
    %192 = vdwg.mxu0
    %vm193 = vcmp.ge.f32.partialorder %v188, 0.0
    %v194 = vmul.f32 %v188, 0.01
    %v195 = vsel %vm193, %v188, %v194
    %v196 = vpack.c.bf16 %v195, %v195
    %v197 = vld [vmem:[#allocation7] sm:$0xf]
    %v198 = vld [vmem:[#allocation7 + $0x4] sm:$0xf]
    %v199 = vld [vmem:[#allocation7 + $0x8] sm:$0xf]
    %v200 = vld [vmem:[#allocation7 + $0xc] sm:$0xf]
    %v201 = vld [vmem:[#allocation7 + $0x10] sm:$0xf]
    %v202 = vld [vmem:[#allocation7 + $0x14] sm:$0xf]
    %v203 = vld [vmem:[#allocation7 + $0x18] sm:$0xf]
    %v204 = vld [vmem:[#allocation7 + $0x1c] sm:$0xf]
    %v205 = vld [vmem:[#allocation7 + $0x20] sm:$0xf]
    %v206 = vld [vmem:[#allocation7 + $0x24] sm:$0xf]
    %v207 = vld [vmem:[#allocation7 + $0x28] sm:$0xf]
    %v208 = vld [vmem:[#allocation7 + $0x2c] sm:$0xf]
    %v209 = vld [vmem:[#allocation7 + $0x30] sm:$0xf]
    %v210 = vld [vmem:[#allocation7 + $0x34] sm:$0xf]
    %v211 = vld [vmem:[#allocation7 + $0x38] sm:$0xf]
    %v212 = vld [vmem:[#allocation7 + $0x3c] sm:$0xf]
    %v213 = vld [vmem:[%s4] sm:$0x1]
    %v215 = vlaneseq
    %v216 = vshrl.u32 %v215, 7
    %v217 = vsub.s32 0, %v216
    %v218 = vrot.slane %v213, %v217
    %v236 = vunpack.c.l.b16 %v197
    %v237 = vunpack.c.l.b16 %v198
    %v238 = vunpack.c.l.b16 %v199
    %v239 = vunpack.c.l.b16 %v200
    %v240 = vunpack.c.l.b16 %v201
    %v241 = vunpack.c.l.b16 %v202
    %v242 = vunpack.c.l.b16 %v203
    %v243 = vunpack.c.l.b16 %v204
    %v244 = vunpack.c.l.b16 %v205
    %v245 = vunpack.c.l.b16 %v206
    %v246 = vunpack.c.l.b16 %v207
    %v247 = vunpack.c.l.b16 %v208
    %v248 = vunpack.c.l.b16 %v209
    %v249 = vunpack.c.l.b16 %v210
    %v250 = vunpack.c.l.b16 %v211
    %v251 = vunpack.c.l.b16 %v212
    %v252 = vpack.c.b16 %v237, %v236
    %v253 = vpack.c.b16 %v239, %v238
    %v254 = vpack.c.b16 %v241, %v240
    %v255 = vpack.c.b16 %v243, %v242
    %v256 = vpack.c.b16 %v245, %v244
    %v257 = vpack.c.b16 %v247, %v246
    %v258 = vpack.c.b16 %v249, %v248
    %v259 = vpack.c.b16 %v251, %v250
    %268 = vmatprep.subr.bf16.mxu0 0
    %269 = vmatpush1.bf16.msra.mxu0 %v259
    %270 = vmatprep.subr.bf16.mxu0 0
    %271 = vmatpush1.bf16.msra.mxu0 %v258
    %272 = vmatprep.subr.bf16.mxu0 0
    %273 = vmatpush1.bf16.msra.mxu0 %v257
    %274 = vmatprep.subr.bf16.mxu0 0
    %275 = vmatpush1.bf16.msra.mxu0 %v256
    %276 = vmatprep.subr.bf16.mxu0 0
    %277 = vmatpush1.bf16.msra.mxu0 %v255
    %278 = vmatprep.subr.bf16.mxu0 0
    %279 = vmatpush1.bf16.msra.mxu0 %v254
    %280 = vmatprep.subr.bf16.mxu0 0
    %281 = vmatpush1.bf16.msra.mxu0 %v253
    %282 = vmatprep.subr.bf16.mxu0 0
    %283 = vmatpush1.bf16.msra.mxu0 %v252
    %284 = vmatprep.subr.bf16.mxu0 0
    %285 = vmatpush2.bf16.msra.mxu0 0
    %286 = vmatprep.subr.bf16.mxu0 0
    %287 = vmatpush2.bf16.msra.mxu0 0
    %288 = vmatprep.subr.bf16.mxu0 0
    %289 = vmatpush2.bf16.msra.mxu0 0
    %290 = vmatprep.subr.bf16.mxu0 0
    %291 = vmatpush2.bf16.msra.mxu0 0
    %292 = vmatprep.subr.bf16.mxu0 0
    %293 = vmatpush2.bf16.msra.mxu0 0
    %294 = vmatprep.subr.bf16.mxu0 0
    %295 = vmatpush2.bf16.msra.mxu0 0
    %296 = vmatprep.subr.bf16.mxu0 0
    %297 = vmatpush2.bf16.msra.mxu0 0
    %298 = vmatprep.subr.bf16.mxu0 0
    %299 = vmatpush2.bf16.msra.mxu0 0
    %300 = vmatprep.mubr.bf16.mxu0 0
    %301 = vmatmul.mubr.bf16.gmra.mxu0 %v196
    %v302 = vpop.f32.mrf.mxu0
    %v303 = vadd.f32 %v218, %v302
    %v304 = vpop.f32.mrf.mxu0
    %v305 = vpop.f32.mrf.mxu0
    %v306 = vpop.f32.mrf.mxu0
    %307 = vdwg.mxu0
    %vm308 = vcmp.ge.f32.partialorder %v303, 0.0
    %v309 = vmul.f32 %v303, 0.01
    %v310 = vsel %vm308, %v303, %v309
    %v311 = vpack.c.bf16 %v310, %v310
    %v312 = vld [vmem:[#allocation8] sm:$0xf]
    %v313 = vld [vmem:[#allocation8 + $0x4] sm:$0xf]
    %v314 = vld [vmem:[#allocation8 + $0x8] sm:$0xf]
    %v315 = vld [vmem:[#allocation8 + $0xc] sm:$0xf]
    %v316 = vld [vmem:[#allocation8 + $0x10] sm:$0xf]
    %v317 = vld [vmem:[#allocation8 + $0x14] sm:$0xf]
    %v318 = vld [vmem:[#allocation8 + $0x18] sm:$0xf]
    %v319 = vld [vmem:[#allocation8 + $0x1c] sm:$0xf]
    %v320 = vld [vmem:[#allocation8 + $0x20] sm:$0xf]
    %v321 = vld [vmem:[#allocation8 + $0x24] sm:$0xf]
    %v322 = vld [vmem:[#allocation8 + $0x28] sm:$0xf]
    %v323 = vld [vmem:[#allocation8 + $0x2c] sm:$0xf]
    %v324 = vld [vmem:[#allocation8 + $0x30] sm:$0xf]
    %v325 = vld [vmem:[#allocation8 + $0x34] sm:$0xf]
    %v326 = vld [vmem:[#allocation8 + $0x38] sm:$0xf]
    %v327 = vld [vmem:[#allocation8 + $0x3c] sm:$0xf]
    %v328 = vld [vmem:[%s6] sm:$0x1]
    %v330 = vlaneseq
    %v331 = vshrl.u32 %v330, 7
    %v332 = vsub.s32 0, %v331
    %v333 = vrot.slane %v328, %v332
    %v351 = vunpack.c.l.b16 %v312
    %v352 = vunpack.c.l.b16 %v313
    %v353 = vunpack.c.l.b16 %v314
    %v354 = vunpack.c.l.b16 %v315
    %v355 = vunpack.c.l.b16 %v316
    %v356 = vunpack.c.l.b16 %v317
    %v357 = vunpack.c.l.b16 %v318
    %v358 = vunpack.c.l.b16 %v319
    %v359 = vunpack.c.l.b16 %v320
    %v360 = vunpack.c.l.b16 %v321
    %v361 = vunpack.c.l.b16 %v322
    %v362 = vunpack.c.l.b16 %v323
    %v363 = vunpack.c.l.b16 %v324
    %v364 = vunpack.c.l.b16 %v325
    %v365 = vunpack.c.l.b16 %v326
    %v366 = vunpack.c.l.b16 %v327
    %v367 = vpack.c.b16 %v352, %v351
    %v368 = vpack.c.b16 %v354, %v353
    %v369 = vpack.c.b16 %v356, %v355
    %v370 = vpack.c.b16 %v358, %v357
    %v371 = vpack.c.b16 %v360, %v359
    %v372 = vpack.c.b16 %v362, %v361
    %v373 = vpack.c.b16 %v364, %v363
    %v374 = vpack.c.b16 %v366, %v365
    %383 = vmatprep.subr.bf16.mxu0 0
    %384 = vmatpush1.bf16.msra.mxu0 %v374
    %385 = vmatprep.subr.bf16.mxu0 0
    %386 = vmatpush1.bf16.msra.mxu0 %v373
    %387 = vmatprep.subr.bf16.mxu0 0
    %388 = vmatpush1.bf16.msra.mxu0 %v372
    %389 = vmatprep.subr.bf16.mxu0 0
    %390 = vmatpush1.bf16.msra.mxu0 %v371
    %391 = vmatprep.subr.bf16.mxu0 0
    %392 = vmatpush1.bf16.msra.mxu0 %v370
    %393 = vmatprep.subr.bf16.mxu0 0
    %394 = vmatpush1.bf16.msra.mxu0 %v369
    %395 = vmatprep.subr.bf16.mxu0 0
    %396 = vmatpush1.bf16.msra.mxu0 %v368
    %397 = vmatprep.subr.bf16.mxu0 0
    %398 = vmatpush1.bf16.msra.mxu0 %v367
    %399 = vmatprep.subr.bf16.mxu0 0
    %400 = vmatpush2.bf16.msra.mxu0 0
    %401 = vmatprep.subr.bf16.mxu0 0
    %402 = vmatpush2.bf16.msra.mxu0 0
    %403 = vmatprep.subr.bf16.mxu0 0
    %404 = vmatpush2.bf16.msra.mxu0 0
    %405 = vmatprep.subr.bf16.mxu0 0
    %406 = vmatpush2.bf16.msra.mxu0 0
    %407 = vmatprep.subr.bf16.mxu0 0
    %408 = vmatpush2.bf16.msra.mxu0 0
    %409 = vmatprep.subr.bf16.mxu0 0
    %410 = vmatpush2.bf16.msra.mxu0 0
    %411 = vmatprep.subr.bf16.mxu0 0
    %412 = vmatpush2.bf16.msra.mxu0 0
    %413 = vmatprep.subr.bf16.mxu0 0
    %414 = vmatpush2.bf16.msra.mxu0 0
    %415 = vmatprep.mubr.bf16.mxu0 0
    %416 = vmatmul.mubr.bf16.gmra.mxu0 %v311
    %v417 = vpop.f32.mrf.mxu0
    %v418 = vadd.f32 %v333, %v417
    %v419 = vpop.f32.mrf.mxu0
    %v420 = vpop.f32.mrf.mxu0
    %v421 = vpop.f32.mrf.mxu0
    %422 = vdwg.mxu0
    %v423 = vpack.c.bf16 %v418, %v418
    %424 = vst [vmem:[#allocation10] sm:$0xf] %v423
    // Predicated region
    $region46: #{tpu_custom_call.1} parent=1 // pred_check
      _
    $region47: #{tpu_custom_call.1} parent=1 // pred_check_branch
      %426 = sbr.rel (0) target = $region49
    $region48: #{tpu_custom_call.1} parent=1 // pred_region
      %s428 = ssub.s32 64, 64
      %429 = vsyncadd [#allocation4], %s428
      %s431 = sshll.u32 [#allocation10], 4
      %s432 = int_to_ptr.vmem [resolvable:$true] %s431
      %434 = dma.vmem_to_hbm [thread:$0]  %s432, 64, %s7, [#allocation4]
    $region49: #{tpu_custom_call.1} parent=1 // pred_fallthru
      _
    // Predicated region
    $region50: #{tpu_custom_call.1} parent=1 // pred_check
      _
    $region51: #{tpu_custom_call.1} parent=1 // pred_check_branch
      %436 = sbr.rel (0) target = $region53
    $region52: #{tpu_custom_call.1} parent=1 // pred_region
      %437 = dma.done [#allocation4], 64
    $region53: #{tpu_custom_call.1} parent=1 // pred_fallthru
      _
    %438 = vsyncpa [#allocation3], 1
    %439 = vsyncpa [#allocation6], 1
    %440 = vsyncpa [#allocation9], 1
    %441 = vsyncpa [#allocation4], 1

</llo_original>
